<compile_context>
chip_gen: v6e
topology: v6e:2x2x1
jax: 0.10.0
libtpu: 0.0.40
codegen_flags: <defaults>
</compile_context>

<pallas_src>
import functools

import jax
import jax.numpy as jnp
from jax.experimental import pallas as pl
from jax.experimental.pallas import tpu as pltpu


def prepare_probe_params(weight, bias):
    """One-time layout prep (outside the per-call path, params are static).

    weight: (output_size, input_size) torch layout -> returns (input_size, output_size)
    bias:   (output_size,)            -> returns (1, output_size)
    """
    w_t = jnp.asarray(weight).T
    b2 = jnp.asarray(bias).reshape(1, -1)
    return w_t, b2


def _linear_kernel(x_ref, w_ref, b_ref, o_ref, acc_ref, *, compute_dtype):
    # x_ref: (TB, TK)  w_ref: (TK, TN)  b_ref: (1, TN)  o_ref: (TB, TN)  acc: (TB, TN) f32
    k = pl.program_id(2)  # K-reduction axis is always the innermost ("arbitrary") axis

    @pl.when(k == 0)
    def _():
        acc_ref[...] = jnp.zeros_like(acc_ref)

    x = x_ref[...]
    w = w_ref[...]
    if compute_dtype is not None:
        x = x.astype(compute_dtype)
        w = w.astype(compute_dtype)
    acc_ref[...] += jnp.dot(x, w, preferred_element_type=jnp.float32)

    @pl.when(k == pl.num_programs(2) - 1)
    def _():
        o_ref[...] = (acc_ref[...] + b_ref[...].astype(jnp.float32)).astype(o_ref.dtype)


def linear_probe_forward(x, w_t, bias2, *, tb=256, tn=256, tk_max=2048,
                         compute_dtype=None, allow_fast_path=True,
                         vmem_budget_bytes=40 * 1024 * 1024):
    """y = x @ w_t + bias  where w_t is the pre-transposed (K, N) weight.

    Equivalent to torch.nn.Linear(input_size, output_size)(x) with
    (w_t, bias2) = prepare_probe_params(linear.weight, linear.bias).
    """
    orig_shape = x.shape
    if x.ndim != 2:  # nn.Linear supports arbitrary leading dims
        x = x.reshape(-1, orig_shape[-1])
    B, K = x.shape
    K2, N = w_t.shape
    assert K == K2, "input_size mismatch"
    assert bias2.shape == (1, N)

    def _unflatten(y):
        return y.reshape(orig_shape[:-1] + (N,)) if len(orig_shape) != 2 else y

    # --- tiny-problem fast path: launch/grid overhead dwarfs compute, let XLA fuse.
    if allow_fast_path and B <= 128 and N <= 128 and K <= 512:
        y = (jnp.dot(x, w_t, preferred_element_type=jnp.float32)
             + bias2.astype(jnp.float32)).astype(x.dtype)
        return _unflatten(y)

    # --- K tiling: only with an exact split (a ragged K block would corrupt the sum).
    if K > tk_max and K % 128 == 0:
        TK = 128
        for cand in range(tk_max - (tk_max % 128), 127, -128):
            if K % cand == 0:
                TK = cand
                break
    else:
        TK = K
    num_k = K // TK

    # --- tile sizes: multiples of (8,128) unless equal to the full (un-padded) dim.
    tb = max(8, tb - tb % 8)
    tn = max(128, tn - tn % 128)
    TB = B if B < tb else tb
    TN = N if N < tn else tn

    itemsize = jnp.dtype(x.dtype).itemsize
    wsz = jnp.dtype(w_t.dtype).itemsize
    bsz = jnp.dtype(bias2.dtype).itemsize
    osz = itemsize

    def footprint(tb_, tn_):
        return (2 * tb_ * TK * itemsize     # x tiles (double-buffered)
                + 2 * TK * tn_ * wsz        # weight tiles
                + 2 * tb_ * tn_ * osz       # output tiles
                + tb_ * tn_ * 4             # f32 accumulator scratch
                + 2 * 1 * tn_ * bsz)        # bias tiles

    # Auto-cap tiles so the double-buffered footprint fits the VMEM budget
    # (v7x has only 64 MiB physical VMEM).
    while footprint(TB, TN) > vmem_budget_bytes:
        if TB > 8:
            TB = max(8, (TB // 2) // 8 * 8)
        elif TN > 128:
            TN = max(128, (TN // 2) // 128 * 128)
        else:
            break

    gb = pl.cdiv(B, TB)
    gn = pl.cdiv(N, TN)

    # --- grid order: stream the operand that costs fewer total HBM bytes.
    if num_k == 1:
        bytes_batch_outer = B * K * itemsize + gb * N * K * wsz   # weight re-streamed
        bytes_n_outer = gn * B * K * itemsize + N * K * wsz       # x re-streamed
        batch_outer = bytes_batch_outer <= bytes_n_outer
    else:
        batch_outer = True  # with K innermost the re-read counts are symmetric
        bytes_batch_outer = gn * B * K * itemsize + gb * N * K * wsz
        bytes_n_outer = bytes_batch_outer

    if batch_outer:
        grid = (gb, gn, num_k)
        x_map = lambda i, j, k: (i, k)
        w_map = lambda i, j, k: (k, j)
        b_map = lambda i, j, k: (0, j)
        o_map = lambda i, j, k: (i, j)
        bytes_accessed = bytes_batch_outer + B * N * osz
    else:
        grid = (gn, gb, num_k)
        x_map = lambda j, i, k: (i, k)
        w_map = lambda j, i, k: (k, j)
        b_map = lambda j, i, k: (0, j)
        o_map = lambda j, i, k: (i, j)
        bytes_accessed = bytes_n_outer + B * N * osz

    cost = pl.CostEstimate(flops=2 * B * K * N, transcendentals=0,
                           bytes_accessed=int(bytes_accessed))

    fp = footprint(TB, TN)
    vmem_limit = int(min(48 * 1024 * 1024, max(fp + 4 * 1024 * 1024, 16 * 1024 * 1024)))

    kernel = functools.partial(_linear_kernel, compute_dtype=compute_dtype)

    out = pl.pallas_call(
        kernel,
        out_shape=jax.ShapeDtypeStruct((B, N), x.dtype),
        grid_spec=pltpu.PrefetchScalarGridSpec(
            num_scalar_prefetch=0,
            grid=grid,
            in_specs=[
                pl.BlockSpec((TB, TK), x_map),   # x tile
                pl.BlockSpec((TK, TN), w_map),   # pre-transposed weight tile (K, N)
                pl.BlockSpec((1, TN), b_map),    # bias slice for this N tile
            ],
            out_specs=pl.BlockSpec((TB, TN), o_map),
            scratch_shapes=[pltpu.VMEM((TB, TN), jnp.float32)],
        ),
        compiler_params=pltpu.CompilerParams(
            dimension_semantics=("parallel", "parallel", "arbitrary"),
            vmem_limit_bytes=vmem_limit,
        ),
        cost_estimate=cost,
    )(x, w_t, bias2)

    return _unflatten(out)


if __name__ == "__main__":
    # Small shapes consistent with LinearProbe(input_size, output_size).
    batch, input_size, output_size = 8, 32, 16

    key = jax.random.PRNGKey(0)
    kx, kw, kb = jax.random.split(key, 3)
    x = jax.random.normal(kx, (batch, input_size), dtype=jnp.float32)
    bound = 1.0 / (input_size ** 0.5)  # mimic nn.Linear uniform(-1/sqrt(K), 1/sqrt(K))
    weight = jax.random.uniform(kw, (output_size, input_size),
                                minval=-bound, maxval=bound, dtype=jnp.float32)
    bias = jax.random.uniform(kb, (output_size,),
                              minval=-bound, maxval=bound, dtype=jnp.float32)

    w_t, b2 = prepare_probe_params(weight, bias)

    # Force the Pallas path at demo size (fast path would route to a plain XLA dot).
    y = linear_probe_forward(x, w_t, b2, allow_fast_path=False)
    jax.block_until_ready(y)
    y_ref = x @ weight.T + bias
    assert y.shape == (batch, output_size)
    assert jnp.allclose(y, y_ref, atol=1e-5, rtol=1e-5)

    # Larger, multi-tile / ragged-edge check (partial blocks, no padding, grid-order swap).
    B2, K2, N2 = 515, 192, 300
    k1, k2, k3 = jax.random.split(jax.random.PRNGKey(1), 3)
    x2 = jax.random.normal(k1, (B2, K2), dtype=jnp.float32)
    w2 = jax.random.normal(k2, (N2, K2), dtype=jnp.float32) * 0.05
    bs2 = jax.random.normal(k3, (N2,), dtype=jnp.float32)
    w_t2, b2_2 = prepare_probe_params(w2, bs2)
    y2 = linear_probe_forward(x2, w_t2, b2_2)
    jax.block_until_ready(y2)
    y2_ref = x2 @ w2.T + bs2
    assert y2.shape == (B2, N2)
    assert jnp.allclose(y2, y2_ref, atol=1e-4, rtol=1e-4)

    print("KERNEL_OK")
</pallas_src>

<mosaic_0001>
module attributes {stable_mosaic.version = 11 : i64} {
  func.func @_linear_kernel(%arg0: i32, %arg1: i32, %arg2: i32, %arg3: memref<8x32xf32, #tpu.memory_space<vmem>>, %arg4: memref<32x16xf32, #tpu.memory_space<vmem>>, %arg5: memref<1x16xf32, #tpu.memory_space<vmem>>, %arg6: memref<8x16xf32, #tpu.memory_space<vmem>>, %arg7: memref<8x16xf32, #tpu.memory_space<vmem>>) attributes {dimension_semantics = [#tpu.dimension_semantics<parallel>, #tpu.dimension_semantics<parallel>, #tpu.dimension_semantics<arbitrary>], iteration_bounds = array<i64: 1, 1, 1>, scalar_prefetch = 0 : i64, scratch_operands = 1 : i64, tpu.core_type = #tpu.core_type<tc>, window_params = [{transform_indices = @transform_0, window_bounds = array<i64: 8, 32>}, {transform_indices = @transform_1, window_bounds = array<i64: 32, 16>}, {transform_indices = @transform_2, window_bounds = array<i64: 1, 16>}, {transform_indices = @transform_3, window_bounds = array<i64: 8, 16>}]} {
    %c0_i32 = arith.constant 0 : i32
    %0 = arith.cmpi eq, %arg2, %c0_i32 : i32
    %1 = arith.extui %0 : i1 to i32
    %c0_i32_0 = arith.constant 0 : i32
    %2 = arith.cmpi ne, %1, %c0_i32_0 : i32
    scf.if %2 {
      %cst_10 = arith.constant 0.000000e+00 : f32
      %12 = vector.broadcast %cst_10 : f32 to vector<8x16xf32>
      %c0_11 = arith.constant 0 : index
      %c0_12 = arith.constant 0 : index
      %13 = vector.load %arg7[%c0_11, %c0_12] : memref<8x16xf32, #tpu.memory_space<vmem>>, vector<8x16xf32>
      tpu.vector_store %arg7[%c0_11, %c0_12], %12 {strides = array<i32>} : memref<8x16xf32, #tpu.memory_space<vmem>>, vector<8x16xf32>,
    } else {
    }
    %c0 = arith.constant 0 : index
    %c0_1 = arith.constant 0 : index
    %3 = vector.load %arg3[%c0, %c0_1] : memref<8x32xf32, #tpu.memory_space<vmem>>, vector<8x32xf32>
    %c0_2 = arith.constant 0 : index
    %c0_3 = arith.constant 0 : index
    %4 = vector.load %arg4[%c0_2, %c0_3] : memref<32x16xf32, #tpu.memory_space<vmem>>, vector<32x16xf32>
    %c0_4 = arith.constant 0 : index
    %c0_5 = arith.constant 0 : index
    %5 = vector.load %arg7[%c0_4, %c0_5] : memref<8x16xf32, #tpu.memory_space<vmem>>, vector<8x16xf32>
    %cst = arith.constant dense<0.000000e+00> : vector<8x16xf32>
    %6 = tpu.matmul %3, %4, %cst {dimension_numbers = #tpu.dot_dimension_numbers<[1], [0], [0], [1], [0, 0, 1, 1], [], []>} : vector<8x32xf32>, vector<32x16xf32>, vector<8x16xf32> -> vector<8x16xf32>
    %7 = arith.addf %5, %6 : vector<8x16xf32>
    %c0_6 = arith.constant 0 : index
    %c0_7 = arith.constant 0 : index
    %8 = vector.load %arg7[%c0_6, %c0_7] : memref<8x16xf32, #tpu.memory_space<vmem>>, vector<8x16xf32>
    tpu.vector_store %arg7[%c0_6, %c0_7], %7 {strides = array<i32>} : memref<8x16xf32, #tpu.memory_space<vmem>>, vector<8x16xf32>,
    %c0_i32_8 = arith.constant 0 : i32
    %9 = arith.cmpi eq, %arg2, %c0_i32_8 : i32
    %10 = arith.extui %9 : i1 to i32
    %c0_i32_9 = arith.constant 0 : i32
    %11 = arith.cmpi ne, %10, %c0_i32_9 : i32
    scf.if %11 {
      %c0_10 = arith.constant 0 : index
      %c0_11 = arith.constant 0 : index
      %12 = vector.load %arg7[%c0_10, %c0_11] : memref<8x16xf32, #tpu.memory_space<vmem>>, vector<8x16xf32>
      %c0_12 = arith.constant 0 : index
      %c0_13 = arith.constant 0 : index
      %13 = vector.load %arg5[%c0_12, %c0_13] : memref<1x16xf32, #tpu.memory_space<vmem>>, vector<1x16xf32>
      %14 = vector.broadcast %13 : vector<1x16xf32> to vector<8x16xf32>
      %15 = arith.addf %12, %14 : vector<8x16xf32>
      %c0_14 = arith.constant 0 : index
      %c0_15 = arith.constant 0 : index
      %16 = vector.load %arg6[%c0_14, %c0_15] : memref<8x16xf32, #tpu.memory_space<vmem>>, vector<8x16xf32>
      tpu.vector_store %arg6[%c0_14, %c0_15], %15 {strides = array<i32>} : memref<8x16xf32, #tpu.memory_space<vmem>>, vector<8x16xf32>,
    } else {
    }
    return
  }
  func.func @transform_0(%arg0: i32, %arg1: i32, %arg2: i32) -> (i32, i32) {
    %c0_i32 = arith.constant 0 : i32
    return %arg0, %arg2 : i32, i32
  }
  func.func @transform_1(%arg0: i32, %arg1: i32, %arg2: i32) -> (i32, i32) {
    %c0_i32 = arith.constant 0 : i32
    return %arg2, %arg1 : i32, i32
  }
  func.func @transform_2(%arg0: i32, %arg1: i32, %arg2: i32) -> (i32, i32) {
    %c0_i32 = arith.constant 0 : i32
    %c0_i32_0 = arith.constant 0 : i32
    return %c0_i32, %arg1 : i32, i32
  }
  func.func @transform_3(%arg0: i32, %arg1: i32, %arg2: i32) -> (i32, i32) {
    %c0_i32 = arith.constant 0 : i32
    return %arg0, %arg1 : i32, i32
  }
}

</mosaic_0001>

<llo_original>
// kernel: tpu_custom_call.1
$region0: #{tpu_custom_call.1}
  #allocation0 [shape = 'u32[]', space=smem, size = 0x4, offset = 0x4, fixed_abs, tag = 'smem constant byte address 0x4 - core index']
  #allocation1 [shape = 'u32[144,128]{1,0:T(1,128)}', space=vmem, size = 0x12000, scoped, tag = 'internal scratch']
  #allocation2 [shape = 'f32[8,16]{1,0:T(8,128)}', space=vmem, size = 0x1000, scoped, tag = 'scratch operand']
  %s0 = inlined_call_operand.vmem [shape: f32[8,32], index: 0, kind: input, shape index: {}]
  %s1 = inlined_call_operand.vmem [shape: f32[32,16], index: 1, kind: input, shape index: {}]
  %s2 = inlined_call_operand.vmem [shape: f32[1,16], index: 2, kind: input, shape index: {}]
  %s3 = inlined_call_operand.hbm [shape: f32[8,16], index: 3, kind: output, shape index: {}]
  %s4 = sld [smem:[#allocation0]]
  $region30: #{tpu_custom_call.1} parent=0
    _
  %s6 = ssub.s32 1, %s4
  %s7 = scalar_select 0, %s6, %s4
  $region1: #{tpu_custom_call.1} parent=0
    #allocation3 [shape = 'u8[4096]{0}', space=vmem, size = 0x1000, scoped, tag = 'output window, operand 0, single buffered']
    #allocation4 [shape = 's32[1]{0}', space=sflag, size = 0x4, scoped, tag = 'scoped memory for tpu_custom_call.1']
    %8 = vsyncpa [#allocation4], 0
    // Predicated region
    $region2: #{tpu_custom_call.1} parent=1 // pred_check
      _
    $region3: #{tpu_custom_call.1} parent=1 // pred_check_branch
      %10 = sbr.rel (0) target = $region5
    $region4: #{tpu_custom_call.1} parent=1 // pred_region
      _
    $region5: #{tpu_custom_call.1} parent=1 // pred_fallthru
      _
    // Predicated region
    $region6: #{tpu_custom_call.1} parent=1 // pred_check
      _
    $region7: #{tpu_custom_call.1} parent=1 // pred_check_branch
      %12 = sbr.rel (0) target = $region9
    $region8: #{tpu_custom_call.1} parent=1 // pred_region
      _
    $region9: #{tpu_custom_call.1} parent=1 // pred_fallthru
      _
    // Predicated region
    $region10: #{tpu_custom_call.1} parent=1 // pred_check
      _
    $region11: #{tpu_custom_call.1} parent=1 // pred_check_branch
      %14 = sbr.rel (0) target = $region13
    $region12: #{tpu_custom_call.1} parent=1 // pred_region
      _
    $region13: #{tpu_custom_call.1} parent=1 // pred_fallthru
      _
    %p15 = scmp.eq.s32.totalorder 0, 0
    // Predicated region
    $region14: #{tpu_custom_call.1} parent=1 // pred_check
      %p16 = pneg %p15
    $region15: #{tpu_custom_call.1} parent=1 // pred_check_branch
      %18 = sbr.rel (%p16) target = $region17
    $region16: #{tpu_custom_call.1} parent=1 // pred_region
      %vm19 = vcmask 130048
      %20 = vst.msk [vmem:[#allocation2] sm:$0xff] %vm19, 0.0
    $region17: #{tpu_custom_call.1} parent=1 // pred_fallthru
      _
    %v21 = vld [vmem:[%s0] sm:$0xff]
    %v22 = vld [vmem:[%s1] sm:$0xff]
    %v23 = vld [vmem:[%s1 + $0x8] sm:$0xff]
    %v24 = vld [vmem:[%s1 + $0x10] sm:$0xff]
    %v25 = vld [vmem:[%s1 + $0x18] sm:$0xff]
    %v26 = vld [vmem:[#allocation2] sm:$0xff]
    %vm27 = vcmask 261120
    %v29 = vsel %vm27, %v21, 0
    %31 = vmatprep.subr.mxu0 0.0
    %32 = vmatpush1.msra.mxu0 0.0
    %33 = vmatprep.subr.mxu0 0.0
    %34 = vmatpush1.msra.mxu0 0.0
    %35 = vmatprep.subr.mxu0 0.0
    %36 = vmatpush1.msra.mxu0 0.0
    %37 = vmatprep.subr.mxu0 0.0
    %38 = vmatpush1.msra.mxu0 0.0
    %39 = vmatprep.subr.mxu0 0.0
    %40 = vmatpush1.msra.mxu0 0.0
    %41 = vmatprep.subr.mxu0 0.0
    %42 = vmatpush1.msra.mxu0 0.0
    %43 = vmatprep.subr.mxu0 0.0
    %44 = vmatpush1.msra.mxu0 0.0
    %45 = vmatprep.subr.mxu0 0.0
    %46 = vmatpush1.msra.mxu0 0.0
    %47 = vmatprep.subr.mxu0 0.0
    %48 = vmatpush1.msra.mxu0 0.0
    %49 = vmatprep.subr.mxu0 0.0
    %50 = vmatpush1.msra.mxu0 0.0
    %51 = vmatprep.subr.mxu0 0.0
    %52 = vmatpush1.msra.mxu0 0.0
    %53 = vmatprep.subr.mxu0 0.0
    %54 = vmatpush1.msra.mxu0 0.0
    %55 = vmatprep.subr.mxu0 0.0
    %56 = vmatpush1.msra.mxu0 %v25
    %57 = vmatprep.subr.mxu0 0.0
    %58 = vmatpush1.msra.mxu0 %v24
    %59 = vmatprep.subr.mxu0 0.0
    %60 = vmatpush1.msra.mxu0 %v23
    %61 = vmatprep.subr.mxu0 0.0
    %62 = vmatpush1.msra.mxu0 %v22
    %63 = vmatprep.subr.mxu0 0.0
    %64 = vmatpush2.msra.mxu0 0.0
    %65 = vmatprep.subr.mxu0 0.0
    %66 = vmatpush2.msra.mxu0 0.0
    %67 = vmatprep.subr.mxu0 0.0
    %68 = vmatpush2.msra.mxu0 0.0
    %69 = vmatprep.subr.mxu0 0.0
    %70 = vmatpush2.msra.mxu0 0.0
    %71 = vmatprep.subr.mxu0 0.0
    %72 = vmatpush2.msra.mxu0 0.0
    %73 = vmatprep.subr.mxu0 0.0
    %74 = vmatpush2.msra.mxu0 0.0
    %75 = vmatprep.subr.mxu0 0.0
    %76 = vmatpush2.msra.mxu0 0.0
    %77 = vmatprep.subr.mxu0 0.0
    %78 = vmatpush2.msra.mxu0 0.0
    %79 = vmatprep.subr.mxu0 0.0
    %80 = vmatpush2.msra.mxu0 0.0
    %81 = vmatprep.subr.mxu0 0.0
    %82 = vmatpush2.msra.mxu0 0.0
    %83 = vmatprep.subr.mxu0 0.0
    %84 = vmatpush2.msra.mxu0 0.0
    %85 = vmatprep.subr.mxu0 0.0
    %86 = vmatpush2.msra.mxu0 0.0
    %87 = vmatprep.subr.mxu0 0.0
    %88 = vmatpush2.msra.mxu0 0.0
    %89 = vmatprep.subr.mxu0 0.0
    %90 = vmatpush2.msra.mxu0 0.0
    %91 = vmatprep.subr.mxu0 0.0
    %92 = vmatpush2.msra.mxu0 0.0
    %93 = vmatprep.subr.mxu0 0.0
    %94 = vmatpush2.msra.mxu0 0.0
    %95 = vmatprep.mubr.f32.mxu0 0.0
    %96 = vmatmul.mubr.f32.gmra.mxu0 %v29
    %v97 = vpop.f32.mrf.mxu0
    %v98 = vadd.f32 0.0, %v97
    %v99 = vpop.f32.mrf.mxu0
    %100 = vdwg.mxu0
    %v101 = vadd.f32 %v26, %v98
    %vm102 = vcmask 130048
    %103 = vst.msk [vmem:[#allocation2] sm:$0xff] %vm102, %v101
    // Predicated region
    $region18: #{tpu_custom_call.1} parent=1 // pred_check
      %p104 = pneg %p15
    $region19: #{tpu_custom_call.1} parent=1 // pred_check_branch
      %106 = sbr.rel (%p104) target = $region21
    $region20: #{tpu_custom_call.1} parent=1 // pred_region
      %v107 = vld [vmem:[#allocation2] sm:$0xff]
      %v108 = vld [vmem:[%s2] sm:$0x1]
      %v110 = vlaneseq
      %v111 = vshrl.u32 %v110, 7
      %v112 = vsub.s32 0, %v111
      %v113 = vrot.slane %v108, %v112
      %v115 = vadd.f32 %v107, %v113
      %116 = vst.msk [vmem:[#allocation3] sm:$0xff] %vm102, %v115
    $region21: #{tpu_custom_call.1} parent=1 // pred_fallthru
      _
    // Predicated region
    $region22: #{tpu_custom_call.1} parent=1 // pred_check
      _
    $region23: #{tpu_custom_call.1} parent=1 // pred_check_branch
      %118 = sbr.rel (0) target = $region25
    $region24: #{tpu_custom_call.1} parent=1 // pred_region
      %s120 = ssub.s32 128, 128
      %121 = vsyncadd [#allocation4], %s120
      %s123 = sshll.u32 [#allocation3], 4
      %s124 = int_to_ptr.vmem [resolvable:$true] %s123
      %126 = dma.vmem_to_hbm [thread:$0]  %s124, 128, %s3, [#allocation4]
    $region25: #{tpu_custom_call.1} parent=1 // pred_fallthru
      _
    // Predicated region
    $region26: #{tpu_custom_call.1} parent=1 // pred_check
      _
    $region27: #{tpu_custom_call.1} parent=1 // pred_check_branch
      %128 = sbr.rel (0) target = $region29
    $region28: #{tpu_custom_call.1} parent=1 // pred_region
      %129 = dma.done [#allocation4], 128
    $region29: #{tpu_custom_call.1} parent=1 // pred_fallthru
      _
    %130 = vsyncpa [#allocation4], 1

</llo_original>
